<compile_context>
chip_gen: v7x
topology: tpu7x:2x2x1
jax: 0.10.0
libtpu: 0.0.40
codegen_flags: <defaults>
</compile_context>

<pallas_src>
import functools

import jax
import jax.numpy as jnp
from jax.experimental import pallas as pl
from jax.experimental.pallas import tpu as pltpu


def _round_up(x, m):
    return (x + m - 1) // m * m


def _tile_and_pad(dim, align, cap):
    """Pick (tile, padded_dim): align | tile, tile | padded_dim, tile <= cap."""
    padded = _round_up(dim, align)
    if padded <= cap:
        return padded, padded
    return cap, _round_up(dim, cap)


# Tile caps (re-derived for v7x's 64 MiB physical / 32 MiB default-scoped VMEM;
# double-buffered worst case at these caps is < 8 MiB, fine on v5e/v6e too).
_TM_CAP = 256
_TN_CAP = 512
_TK_CAP = 1024
_VMEM_LIMIT = 48 * 1024 * 1024


# ----------------------------------------------------------------------------
# Kernels
# ----------------------------------------------------------------------------
def _linear_sigmoid_kernel(x_ref, w_ref, b_ref, o_ref):
    # Single K block per (i, j) tile: one MXU dot + fused bias/sigmoid epilogue.
    # Weight is already (tk, tn) -> plain vmatmul, no in-kernel transpose.
    acc = jnp.dot(x_ref[...].astype(w_ref.dtype), w_ref[...],
                  preferred_element_type=jnp.float32)
    o_ref[...] = jax.nn.sigmoid(acc + b_ref[...])


def _linear_sigmoid_reduce_kernel(x_ref, w_ref, b_ref, o_ref):
    # K is the innermost ("arbitrary") grid axis; the f32 output block is
    # resident across it (block index ignores k) and doubles as accumulator.
    k = pl.program_id(2)

    @pl.when(k == 0)
    def _():
        o_ref[...] = jnp.zeros_like(o_ref)

    o_ref[...] += jnp.dot(x_ref[...].astype(w_ref.dtype), w_ref[...],
                          preferred_element_type=jnp.float32)

    @pl.when(k == pl.num_programs(2) - 1)
    def _():
        o_ref[...] = jax.nn.sigmoid(o_ref[...] + b_ref[...])


# ----------------------------------------------------------------------------
# One-time parameter re-layout (hoisted out of the per-forward path)
# ----------------------------------------------------------------------------
def prepare_params(weight, bias, *, compute_dtype=jnp.float32):
    """weight: (out_ch, in_ch) PyTorch nn.Linear layout; bias: (out_ch,).

    Returns (w_kn, b_row, out_ch): w_kn is (k_pad, n_pad) in compute_dtype
    (transposed + zero-padded to the tile grid), b_row is (1, n_pad) f32.
    Call once at parameter load, not per forward.
    """
    out_ch, in_ch = weight.shape
    _, k_pad = _tile_and_pad(in_ch, 128, _TK_CAP)
    _, n_pad = _tile_and_pad(out_ch, 128, _TN_CAP)
    w_kn = jnp.pad(weight.T, ((0, k_pad - in_ch), (0, n_pad - out_ch)))
    w_kn = w_kn.astype(compute_dtype)
    b_row = jnp.pad(bias, (0, n_pad - out_ch)).astype(jnp.float32).reshape(1, n_pad)
    return w_kn, b_row, out_ch


# ----------------------------------------------------------------------------
# Forward
# ----------------------------------------------------------------------------
@functools.partial(jax.jit, static_argnames=("out_ch",))
def linear_sigmoid_forward(x, w_kn, b_row, *, out_ch):
    """sigmoid(x @ W.T + b) using (w_kn, b_row, out_ch) from prepare_params."""
    bs, in_ch = x.shape
    k_pad, n_pad = w_kn.shape

    tm, m_pad = _tile_and_pad(bs, 16, _TM_CAP)
    tk = k_pad if k_pad <= _TK_CAP else _TK_CAP   # by construction tk | k_pad
    tn = n_pad if n_pad <= _TN_CAP else _TN_CAP   # by construction tn | n_pad

    x_p = x
    if (m_pad, k_pad) != (bs, in_ch):
        x_p = jnp.pad(x, ((0, m_pad - bs), (0, k_pad - in_ch)))

    gm, gn, gk = m_pad // tm, n_pad // tn, k_pad // tk
    out_shape = jax.ShapeDtypeStruct((m_pad, n_pad), jnp.float32)

    if gk == 1:
        # No reduction axis: grid (M, N), one dot per tile, no scratch.
        out = pl.pallas_call(
            _linear_sigmoid_kernel,
            out_shape=out_shape,
            grid_spec=pltpu.PrefetchScalarGridSpec(
                num_scalar_prefetch=0,
                grid=(gm, gn),
                in_specs=[
                    pl.BlockSpec((tm, tk), lambda i, j: (i, 0)),   # x
                    pl.BlockSpec((tk, tn), lambda i, j: (0, j)),   # W in (K, N)
                    pl.BlockSpec((1, tn), lambda i, j: (0, j)),    # bias
                ],
                out_specs=pl.BlockSpec((tm, tn), lambda i, j: (i, j)),
            ),
            compiler_params=pltpu.CompilerParams(
                dimension_semantics=("parallel", "parallel"),
                vmem_limit_bytes=_VMEM_LIMIT),
        )(x_p, w_kn, b_row)
    else:
        # K reduction: innermost "arbitrary" axis, f32 output acts as acc.
        out = pl.pallas_call(
            _linear_sigmoid_reduce_kernel,
            out_shape=out_shape,
            grid_spec=pltpu.PrefetchScalarGridSpec(
                num_scalar_prefetch=0,
                grid=(gm, gn, gk),
                in_specs=[
                    pl.BlockSpec((tm, tk), lambda i, j, k: (i, k)),   # x
                    pl.BlockSpec((tk, tn), lambda i, j, k: (k, j)),   # W (K, N)
                    pl.BlockSpec((1, tn), lambda i, j, k: (0, j)),    # bias
                ],
                out_specs=pl.BlockSpec((tm, tn), lambda i, j, k: (i, j)),
            ),
            compiler_params=pltpu.CompilerParams(
                dimension_semantics=("parallel", "parallel", "arbitrary"),
                vmem_limit_bytes=_VMEM_LIMIT),
        )(x_p, w_kn, b_row)

    return out[:bs, :out_ch].astype(x.dtype)


def sample_model_forward(x, weight, bias, *, compute_dtype=jnp.float32):
    """Convenience path matching the PyTorch module signature (weight in
    (out_ch, in_ch) layout). For repeated calls, prefer prepare_params() once
    followed by linear_sigmoid_forward()."""
    w_kn, b_row, out_ch = prepare_params(weight, bias, compute_dtype=compute_dtype)
    return linear_sigmoid_forward(x, w_kn, b_row, out_ch=out_ch)


if __name__ == "__main__":
    key = jax.random.PRNGKey(0)
    keys = jax.random.split(key, 9)

    # --- Module-sized case: bs=8, input_channel=32, output_channel=16 -------
    bs, in_ch, out_ch = 8, 32, 16
    x = jax.random.normal(keys[0], (bs, in_ch), dtype=jnp.float32)
    w = jax.random.normal(keys[1], (out_ch, in_ch), dtype=jnp.float32) * 0.05
    b = jax.random.normal(keys[2], (out_ch,), dtype=jnp.float32) * 0.01

    w_kn, b_row, oc = prepare_params(w, b)            # one-time layout/pad
    out = jax.block_until_ready(linear_sigmoid_forward(x, w_kn, b_row, out_ch=oc))
    ref = jax.nn.sigmoid(x @ w.T + b)
    assert out.shape == (bs, out_ch)
    assert jnp.allclose(out, ref, atol=1e-5, rtol=1e-5)

    # --- Larger f32 case: multi-block M/N grid, no K reduction --------------
    bs2, in2, out2 = 512, 384, 320
    x2 = jax.random.normal(keys[3], (bs2, in2), dtype=jnp.float32)
    w2 = jax.random.normal(keys[4], (out2, in2), dtype=jnp.float32) * 0.05
    b2 = jax.random.normal(keys[5], (out2,), dtype=jnp.float32) * 0.01
    w2_kn, b2_row, oc2 = prepare_params(w2, b2)
    o2 = jax.block_until_ready(linear_sigmoid_forward(x2, w2_kn, b2_row, out_ch=oc2))
    ref2 = jax.nn.sigmoid(x2 @ w2.T + b2)
    assert o2.shape == (bs2, out2)
    assert jnp.allclose(o2, ref2, atol=1e-3, rtol=1e-3)

    # --- bf16 MXU path on the same shape (f32 accumulation + epilogue) ------
    w2b_kn, b2b_row, oc2b = prepare_params(w2, b2, compute_dtype=jnp.bfloat16)
    o2b = jax.block_until_ready(
        linear_sigmoid_forward(x2, w2b_kn, b2b_row, out_ch=oc2b))
    assert jnp.allclose(o2b, ref2, atol=1e-2, rtol=1e-2)

    # --- K-reduction path: in_ch > TK cap -> (M, N, K) grid, in-place acc ---
    bs3, in3, out3 = 64, 2048, 384
    x3 = jax.random.normal(keys[6], (bs3, in3), dtype=jnp.float32)
    w3 = jax.random.normal(keys[7], (out3, in3), dtype=jnp.float32) * 0.05
    b3 = jax.random.normal(keys[8], (out3,), dtype=jnp.float32) * 0.01
    w3_kn, b3_row, oc3 = prepare_params(w3, b3)
    o3 = jax.block_until_ready(linear_sigmoid_forward(x3, w3_kn, b3_row, out_ch=oc3))
    ref3 = jax.nn.sigmoid(x3 @ w3.T + b3)
    assert o3.shape == (bs3, out3)
    assert jnp.allclose(o3, ref3, atol=5e-3, rtol=5e-3)

    print("KERNEL_OK")
</pallas_src>

<mosaic_0001>
module attributes {stable_mosaic.version = 11 : i64} {
  func.func @_linear_sigmoid_kernel(%arg0: i32, %arg1: i32, %arg2: memref<16x128xf32, #tpu.memory_space<vmem>>, %arg3: memref<128x128xf32, #tpu.memory_space<vmem>>, %arg4: memref<1x128xf32, #tpu.memory_space<vmem>>, %arg5: memref<16x128xf32, #tpu.memory_space<vmem>>) attributes {dimension_semantics = [#tpu.dimension_semantics<parallel>, #tpu.dimension_semantics<parallel>], iteration_bounds = array<i64: 1, 1>, scalar_prefetch = 0 : i64, scratch_operands = 0 : i64, tpu.core_type = #tpu.core_type<tc>, window_params = [{transform_indices = @transform_0, window_bounds = array<i64: 16, 128>}, {transform_indices = @transform_1, window_bounds = array<i64: 128, 128>}, {transform_indices = @transform_2, window_bounds = array<i64: 1, 128>}, {transform_indices = @transform_3, window_bounds = array<i64: 16, 128>}]} {
    %c0 = arith.constant 0 : index
    %c0_0 = arith.constant 0 : index
    %0 = vector.load %arg2[%c0, %c0_0] : memref<16x128xf32, #tpu.memory_space<vmem>>, vector<16x128xf32>
    %c0_1 = arith.constant 0 : index
    %c0_2 = arith.constant 0 : index
    %1 = vector.load %arg3[%c0_1, %c0_2] : memref<128x128xf32, #tpu.memory_space<vmem>>, vector<128x128xf32>
    %cst = arith.constant dense<0.000000e+00> : vector<16x128xf32>
    %2 = tpu.matmul %0, %1, %cst {dimension_numbers = #tpu.dot_dimension_numbers<[1], [0], [0], [1], [0, 0, 1, 1], [], []>} : vector<16x128xf32>, vector<128x128xf32>, vector<16x128xf32> -> vector<16x128xf32>
    %c0_3 = arith.constant 0 : index
    %c0_4 = arith.constant 0 : index
    %3 = vector.load %arg4[%c0_3, %c0_4] : memref<1x128xf32, #tpu.memory_space<vmem>>, vector<1x128xf32>
    %4 = vector.broadcast %3 : vector<1x128xf32> to vector<16x128xf32>
    %5 = arith.addf %2, %4 : vector<16x128xf32>
    %6 = arith.negf %5 : vector<16x128xf32>
    %7 = math.exp %6 : vector<16x128xf32>
    %cst_5 = arith.constant 1.000000e+00 : f32
    %8 = vector.broadcast %cst_5 : f32 to vector<16x128xf32>
    %9 = arith.addf %8, %7 : vector<16x128xf32>
    %10 = arith.divf %8, %9 : vector<16x128xf32>
    %c0_6 = arith.constant 0 : index
    %c0_7 = arith.constant 0 : index
    %11 = vector.load %arg5[%c0_6, %c0_7] : memref<16x128xf32, #tpu.memory_space<vmem>>, vector<16x128xf32>
    tpu.vector_store %arg5[%c0_6, %c0_7], %10 {strides = array<i32>} : memref<16x128xf32, #tpu.memory_space<vmem>>, vector<16x128xf32>,
    return
  }
  func.func @transform_0(%arg0: i32, %arg1: i32) -> (i32, i32) {
    %c0_i32 = arith.constant 0 : i32
    %c0_i32_0 = arith.constant 0 : i32
    return %arg0, %c0_i32 : i32, i32
  }
  func.func @transform_1(%arg0: i32, %arg1: i32) -> (i32, i32) {
    %c0_i32 = arith.constant 0 : i32
    %c0_i32_0 = arith.constant 0 : i32
    return %c0_i32, %arg1 : i32, i32
  }
  func.func @transform_2(%arg0: i32, %arg1: i32) -> (i32, i32) {
    %c0_i32 = arith.constant 0 : i32
    %c0_i32_0 = arith.constant 0 : i32
    return %c0_i32, %arg1 : i32, i32
  }
  func.func @transform_3(%arg0: i32, %arg1: i32) -> (i32, i32) {
    %c0_i32 = arith.constant 0 : i32
    return %arg0, %arg1 : i32, i32
  }
}

</mosaic_0001>

<llo_original>
// kernel: linear_sigmoid_forward.1
$region0: #{linear_sigmoid_forward.1}
  #allocation0 [shape = 'u32[]', space=smem, size = 0x4, offset = 0x4, fixed_abs, tag = 'smem constant byte address 0x4 - core index']
  #allocation1 [shape = 'u32[144,128]{1,0:T(1,128)}', space=vmem, size = 0x12000, scoped, tag = 'internal scratch']
  %s0 = inlined_call_operand.vmem [shape: f32[16,128], index: 0, kind: input, shape index: {}]
  %s1 = inlined_call_operand.hbm [shape: f32[128,128], index: 1, kind: input, shape index: {}]
  %s2 = inlined_call_operand.vmem [shape: f32[1,128], index: 2, kind: input, shape index: {}]
  %s3 = inlined_call_operand.vmem [shape: f32[16,128], index: 3, kind: output, shape index: {}]
  %s4 = sld [smem:[#allocation0]]
  $region26: #{linear_sigmoid_forward.1} parent=0
    _
  %s6 = ssub.s32 1, %s4
  %s7 = scalar_select 0, %s6, %s4
  $region1: #{linear_sigmoid_forward.1} parent=0
    #allocation2 [shape = 'u8[65536]{0}', space=vmem, size = 0x10000, scoped, tag = 'input window, operand 1, single buffered']
    #allocation3 [shape = 's32[1]{0}', space=sflag, size = 0x4, scoped, tag = 'scoped memory for linear_sigmoid_forward.1']
    %8 = vsyncpa [#allocation3], 0
    // Predicated region
    $region2: #{linear_sigmoid_forward.1} parent=1 // pred_check
      _
    $region3: #{linear_sigmoid_forward.1} parent=1 // pred_check_branch
      %10 = sbr.rel (0) target = $region5
    $region4: #{linear_sigmoid_forward.1} parent=1 // pred_region
      _
    $region5: #{linear_sigmoid_forward.1} parent=1 // pred_fallthru
      _
    // Predicated region
    $region6: #{linear_sigmoid_forward.1} parent=1 // pred_check
      _
    $region7: #{linear_sigmoid_forward.1} parent=1 // pred_check_branch
      %12 = sbr.rel (0) target = $region9
    $region8: #{linear_sigmoid_forward.1} parent=1 // pred_region
      %s14 = ssub.s32 2048, 2048
      %15 = vsyncadd [#allocation3], %s14
      %s16 = sshll.u32 [#allocation2], 4
      %s17 = int_to_ptr.vmem [resolvable:$true] %s16
      %22 = dma.hbm_to_vmem [thread:$0]  %s1, 2048, %s17, [#allocation3], 128, 128, 8
    $region9: #{linear_sigmoid_forward.1} parent=1 // pred_fallthru
      _
    // Predicated region
    $region10: #{linear_sigmoid_forward.1} parent=1 // pred_check
      _
    $region11: #{linear_sigmoid_forward.1} parent=1 // pred_check_branch
      %24 = sbr.rel (0) target = $region13
    $region12: #{linear_sigmoid_forward.1} parent=1 // pred_region
      _
    $region13: #{linear_sigmoid_forward.1} parent=1 // pred_fallthru
      _
    // Predicated region
    $region14: #{linear_sigmoid_forward.1} parent=1 // pred_check
      _
    $region15: #{linear_sigmoid_forward.1} parent=1 // pred_check_branch
      %26 = sbr.rel (0) target = $region17
    $region16: #{linear_sigmoid_forward.1} parent=1 // pred_region
      %27 = dma.done [#allocation3], 2048
    $region17: #{linear_sigmoid_forward.1} parent=1 // pred_fallthru
      _
    %v28 = vld [vmem:[%s0] sm:$0xff]
    %v29 = vld [vmem:[%s0 + $0x8] sm:$0xff]
    %v30 = vld [vmem:[#allocation2] sm:$0xff]
    %v31 = vld [vmem:[#allocation2 + $0x8] sm:$0xff]
    %v32 = vld [vmem:[#allocation2 + $0x10] sm:$0xff]
    %v33 = vld [vmem:[#allocation2 + $0x18] sm:$0xff]
    %v34 = vld [vmem:[#allocation2 + $0x20] sm:$0xff]
    %v35 = vld [vmem:[#allocation2 + $0x28] sm:$0xff]
    %v36 = vld [vmem:[#allocation2 + $0x30] sm:$0xff]
    %v37 = vld [vmem:[#allocation2 + $0x38] sm:$0xff]
    %v38 = vld [vmem:[#allocation2 + $0x40] sm:$0xff]
    %v39 = vld [vmem:[#allocation2 + $0x48] sm:$0xff]
    %v40 = vld [vmem:[#allocation2 + $0x50] sm:$0xff]
    %v41 = vld [vmem:[#allocation2 + $0x58] sm:$0xff]
    %v42 = vld [vmem:[#allocation2 + $0x60] sm:$0xff]
    %v43 = vld [vmem:[#allocation2 + $0x68] sm:$0xff]
    %v44 = vld [vmem:[#allocation2 + $0x70] sm:$0xff]
    %v45 = vld [vmem:[#allocation2 + $0x78] sm:$0xff]
    %v46 = vld [vmem:[%s2] sm:$0x1]
    %v48 = vlaneseq
    %v49 = vshrl.u32 %v48, 7
    %v50 = vsub.s32 0, %v49
    %v51 = vrot.slane %v46, %v50
    %53 = vmatprep.subr.mxu0 0.0
    %54 = vmatpush1.msra.mxu0 %v30
    %55 = vmatprep.subr.mxu0 0.0
    %56 = vmatpush1.msra.mxu0 %v31
    %57 = vmatprep.subr.mxu0 0.0
    %58 = vmatpush1.msra.mxu0 %v32
    %59 = vmatprep.subr.mxu0 0.0
    %60 = vmatpush1.msra.mxu0 %v33
    %61 = vmatprep.subr.mxu0 0.0
    %62 = vmatpush1.msra.mxu0 %v34
    %63 = vmatprep.subr.mxu0 0.0
    %64 = vmatpush1.msra.mxu0 %v35
    %65 = vmatprep.subr.mxu0 0.0
    %66 = vmatpush1.msra.mxu0 %v36
    %67 = vmatprep.subr.mxu0 0.0
    %68 = vmatpush1.msra.mxu0 %v37
    %69 = vmatprep.subr.mxu0 0.0
    %70 = vmatpush1.msra.mxu0 %v38
    %71 = vmatprep.subr.mxu0 0.0
    %72 = vmatpush1.msra.mxu0 %v39
    %73 = vmatprep.subr.mxu0 0.0
    %74 = vmatpush1.msra.mxu0 %v40
    %75 = vmatprep.subr.mxu0 0.0
    %76 = vmatpush1.msra.mxu0 %v41
    %77 = vmatprep.subr.mxu0 0.0
    %78 = vmatpush1.msra.mxu0 %v42
    %79 = vmatprep.subr.mxu0 0.0
    %80 = vmatpush1.msra.mxu0 %v43
    %81 = vmatprep.subr.mxu0 0.0
    %82 = vmatpush1.msra.mxu0 %v44
    %83 = vmatprep.subr.mxu0 0.0
    %84 = vmatpush1.msra.mxu0 %v45
    %85 = vmatprep.subr.mxu0 0.0
    %86 = vmatpush1.msra.mxu0 0.0
    %87 = vmatprep.subr.mxu0 0.0
    %88 = vmatpush1.msra.mxu0 0.0
    %89 = vmatprep.subr.mxu0 0.0
    %90 = vmatpush1.msra.mxu0 0.0
    %91 = vmatprep.subr.mxu0 0.0
    %92 = vmatpush1.msra.mxu0 0.0
    %93 = vmatprep.subr.mxu0 0.0
    %94 = vmatpush1.msra.mxu0 0.0
    %95 = vmatprep.subr.mxu0 0.0
    %96 = vmatpush1.msra.mxu0 0.0
    %97 = vmatprep.subr.mxu0 0.0
    %98 = vmatpush1.msra.mxu0 0.0
    %99 = vmatprep.subr.mxu0 0.0
    %100 = vmatpush1.msra.mxu0 0.0
    %101 = vmatprep.subr.mxu0 0.0
    %102 = vmatpush1.msra.mxu0 0.0
    %103 = vmatprep.subr.mxu0 0.0
    %104 = vmatpush1.msra.mxu0 0.0
    %105 = vmatprep.subr.mxu0 0.0
    %106 = vmatpush1.msra.mxu0 0.0
    %107 = vmatprep.subr.mxu0 0.0
    %108 = vmatpush1.msra.mxu0 0.0
    %109 = vmatprep.subr.mxu0 0.0
    %110 = vmatpush1.msra.mxu0 0.0
    %111 = vmatprep.subr.mxu0 0.0
    %112 = vmatpush1.msra.mxu0 0.0
    %113 = vmatprep.subr.mxu0 0.0
    %114 = vmatpush1.msra.mxu0 0.0
    %115 = vmatprep.subr.mxu0 0.0
    %116 = vmatpush1.msra.mxu0 0.0
    %117 = vmatprep.mubr.f32.mxu0 0.0
    %118 = vmatmul.mubr.f32.gmra.mrb[0].mxu0 %v28
    %v119 = vpop.f32.mrb[0].mxu0
    %v120 = vadd.f32 %v51, %v119
    %v121 = vpop.f32.mrb[0].mxu0
    %122 = vmatprep.mubr.f32.mxu0 0.0
    %123 = vmatmul.mubr.f32.gmra.mrb[0].mxu0 %v29
    %v124 = vpop.f32.mrb[0].mxu0
    %v125 = vadd.f32 %v51, %v124
    %v126 = vpop.f32.mrb[0].mxu0
    %127 = vdwg.mxu0
    %v128 = vxor.u32 %v120, 2147483648
    %v129 = vxor.u32 %v125, 2147483648
    %v130 = vmul.f32 %v128, 1.442695
    %v131 = vpow.pop %v130
    %v132 = vmul.f32 %v129, 1.442695
    %v133 = vpow.pop %v132
    %v134 = vadd.f32 %v131, 1.0
    %v135 = vadd.f32 %v133, 1.0
    %v136 = vrcp.pop %v134
    %v137 = vmul.f32 1.0, %v136
    %v138 = vrcp.pop %v135
    %v139 = vmul.f32 1.0, %v138
    %140 = vst [vmem:[%s3] sm:$0xff] %v137
    %141 = vst [vmem:[%s3 + $0x8] sm:$0xff] %v139
    // Predicated region
    $region18: #{linear_sigmoid_forward.1} parent=1 // pred_check
      _
    $region19: #{linear_sigmoid_forward.1} parent=1 // pred_check_branch
      %143 = sbr.rel (0) target = $region21
    $region20: #{linear_sigmoid_forward.1} parent=1 // pred_region
      _
    $region21: #{linear_sigmoid_forward.1} parent=1 // pred_fallthru
      _
    // Predicated region
    $region22: #{linear_sigmoid_forward.1} parent=1 // pred_check
      _
    $region23: #{linear_sigmoid_forward.1} parent=1 // pred_check_branch
      %145 = sbr.rel (0) target = $region25
    $region24: #{linear_sigmoid_forward.1} parent=1 // pred_region
      _
    $region25: #{linear_sigmoid_forward.1} parent=1 // pred_fallthru
      _
    %146 = vsyncpa [#allocation3], 1

</llo_original>
